<compile_context>
chip_gen: v6e
topology: v6e:2x2x1
jax: 0.10.0
libtpu: 0.0.40
codegen_flags: <defaults>
</compile_context>

<pallas_src>
import jax
import jax.numpy as jnp
from jax.experimental import pallas as pl
from jax.experimental.pallas import tpu as pltpu


def _tanh_dup_kernel(x_ref, o_ref):
    # x_ref: (tn, tc) tile of x_flat.reshape(R, C)
    # o_ref: (2, tn, tc) — the two duplicated halves of the output.
    t = jnp.tanh(x_ref[...])
    o_ref[0, ...] = t          # first copy
    o_ref[1, ...] = t          # second copy (duplicate store; vst not a bottleneck)


def _sublane(dtype):
    itemsize = jnp.dtype(dtype).itemsize
    return {4: 8, 2: 16, 1: 32}.get(itemsize, 8)


def _vmem_budgets():
    """(pipeline_buffer_budget, vmem_limit_bytes), derived per TPU generation."""
    cap = 64 * 1024 * 1024
    try:
        info = pltpu.get_tpu_info()
        cap = int(getattr(info, "vmem_capacity_bytes", cap)) or cap
    except Exception:
        pass  # conservative default below is safe on every generation
    if cap >= 96 * 1024 * 1024:                      # v5e / v6e: 128 MiB physical
        return 48 * 1024 * 1024, 64 * 1024 * 1024
    return 32 * 1024 * 1024, 48 * 1024 * 1024        # v7x: 64 MiB physical


def _canonical_2d(total, shape):
    """Contiguous 2-D factorization of the flat input with a lane-dense last
    dim (large multiple of 128) whenever one divides numel."""
    for c in (2048, 1024, 512, 256, 128):
        if total % c == 0:
            return total // c, c
    # No multiple of 128 divides numel: keep the natural trailing-dim layout
    # (still correct; trailing lane stores are masked).
    last = shape[-1] if len(shape) >= 2 else total
    return total // last, last


_TARGET_IN_BYTES = 4 * 1024 * 1024   # ~4 MiB input block -> ~12 MiB HBM traffic/step
_BUFS = 6                            # double-buffered (1 input + 2 output) blocks


def _choose_tiles(R, C, dtype, budget):
    """Pick (row_tile, col_tile) for the (R, C) canonical view."""
    sub = _sublane(dtype)
    itemsize = jnp.dtype(dtype).itemsize
    row_bytes = C * itemsize

    # Very wide rows: tile the lane axis too, otherwise even a minimal-height
    # full-width block would blow the VMEM budget (important on v7x's 64 MiB).
    if _BUFS * min(R, sub) * row_bytes > budget:
        tn = min(R, sub)
        tc = min(budget // (_BUFS * tn * itemsize),
                 max(1, _TARGET_IN_BYTES // (tn * itemsize)))
        tc = max(128, (tc // 128) * 128)
        tc = min(tc, C)
        return tn, tc

    # Normal case: full-width rows, tile only the (sublane) row axis.
    vmem_rows = budget // (_BUFS * row_bytes)
    tgt_rows = max(1, _TARGET_IN_BYTES // max(1, row_bytes))
    tn = min(R, vmem_rows, tgt_rows)

    # Megacore: if everything would fit one block but the input is "large",
    # force >= 2 row blocks so both v7x TensorCores get work.
    if tn >= R and R * row_bytes >= 2 * 1024 * 1024 and R >= 2 * sub:
        tn = R // 2

    if tn < R:
        tn = max(sub, (tn // sub) * sub)
    if tn >= R:
        return R, C

    # Prefer a nearby sublane-aligned tile that evenly divides R (avoids a
    # ragged, partially-masked trailing block) when one exists.
    t = tn
    while t >= max(sub, (3 * tn) // 4):
        if R % t == 0:
            tn = t
            break
        t -= sub
    return tn, C


def sink_cat_input(x):
    """Pallas TPU version of SinkCatInput.forward."""
    assert x.ndim >= 1 and 1 not in x.shape, (
        "SinkCatInput semantics require an input with no size-1 dims "
        "(otherwise torch.cat((squeeze(x), x), 0) is ill-formed)"
    )
    n = x.shape[0]
    total = int(x.size)
    m2 = 2 * (total // n)
    itemsize = jnp.dtype(x.dtype).itemsize

    budget, vmem_limit = _vmem_budgets()
    R, C = _canonical_2d(total, x.shape)
    tn, tc = _choose_tiles(R, C, x.dtype, budget)
    grid = (pl.cdiv(R, tn), pl.cdiv(C, tc))

    cost = pl.CostEstimate(
        flops=0,
        transcendentals=total,                    # tanh once per input element
        bytes_accessed=3 * total * itemsize,      # read numel, write 2*numel
    )

    out3 = pl.pallas_call(
        _tanh_dup_kernel,
        out_shape=jax.ShapeDtypeStruct((2, R, C), x.dtype),
        grid=grid,
        in_specs=[pl.BlockSpec((tn, tc), lambda i, j: (i, j))],
        out_specs=pl.BlockSpec((2, tn, tc), lambda i, j: (0, i, j)),
        compiler_params=pltpu.CompilerParams(
            dimension_semantics=("parallel", "parallel"),
            vmem_limit_bytes=vmem_limit,
        ),
        cost_estimate=cost,
    )(x.reshape(R, C))                            # free contiguous view

    return out3.reshape(n, m2)                    # free contiguous view


if __name__ == "__main__":
    key = jax.random.PRNGKey(0)

    # Small lane-dense demo (even N): output last dim 2M = 128.
    x = jax.random.normal(key, (16, 64), dtype=jnp.float32)
    out = jax.block_until_ready(sink_cat_input(x))
    ref = jnp.tanh(
        jnp.concatenate([jnp.squeeze(x), x], axis=0).reshape(x.shape[0], -1)
    )
    assert out.shape == ref.shape, (out.shape, ref.shape)
    assert jnp.allclose(out, ref, atol=1e-6, rtol=1e-6)

    # Odd-N shape — handled by the same unified kernel (no concat fallback).
    x_odd = jax.random.normal(jax.random.PRNGKey(1), (9, 48), dtype=jnp.float32)
    out_odd = jax.block_until_ready(sink_cat_input(x_odd))
    ref_odd = jnp.tanh(
        jnp.concatenate([jnp.squeeze(x_odd), x_odd], axis=0)
        .reshape(x_odd.shape[0], -1)
    )
    assert out_odd.shape == ref_odd.shape, (out_odd.shape, ref_odd.shape)
    assert jnp.allclose(out_odd, ref_odd, atol=1e-6, rtol=1e-6)

    # Moderately larger shape that exercises the multi-block (megacore) tiling.
    x_big = jax.random.normal(jax.random.PRNGKey(2), (1024, 1024), dtype=jnp.float32)
    out_big = jax.block_until_ready(sink_cat_input(x_big))
    ref_big = jnp.tanh(
        jnp.concatenate([x_big, x_big], axis=0).reshape(x_big.shape[0], -1)
    )
    assert out_big.shape == ref_big.shape, (out_big.shape, ref_big.shape)
    assert jnp.allclose(out_big, ref_big, atol=1e-6, rtol=1e-6)

    print("KERNEL_OK")
</pallas_src>

<mosaic_0001>
module attributes {stable_mosaic.version = 11 : i64} {
  func.func @_tanh_dup_kernel(%arg0: i32, %arg1: i32, %arg2: memref<1x1024xf32, #tpu.memory_space<vmem>>, %arg3: memref<2x1x1024xf32, #tpu.memory_space<vmem>>) attributes {dimension_semantics = [#tpu.dimension_semantics<parallel>, #tpu.dimension_semantics<parallel>], iteration_bounds = array<i64: 1, 1>, scalar_prefetch = 0 : i64, scratch_operands = 0 : i64, tpu.core_type = #tpu.core_type<tc>, window_params = [{transform_indices = @transform_0, window_bounds = array<i64: 1, 1024>}, {transform_indices = @transform_1, window_bounds = array<i64: 2, 1, 1024>}]} {
    %c0 = arith.constant 0 : index
    %c0_0 = arith.constant 0 : index
    %0 = vector.load %arg2[%c0, %c0_0] : memref<1x1024xf32, #tpu.memory_space<vmem>>, vector<1x1024xf32>
    %1 = math.tanh %0 : vector<1x1024xf32>
    %c0_1 = arith.constant 0 : index
    %c0_2 = arith.constant 0 : index
    %c0_3 = arith.constant 0 : index
    %2 = vector.load %arg3[%c0_1, %c0_2, %c0_3] : memref<2x1x1024xf32, #tpu.memory_space<vmem>>, vector<1x1x1024xf32>
    %3 = vector.shape_cast %2 : vector<1x1x1024xf32> to vector<1x1024xf32>
    %4 = vector.shape_cast %1 : vector<1x1024xf32> to vector<1x1x1024xf32>
    tpu.vector_store %arg3[%c0_1, %c0_2, %c0_3], %4 {strides = array<i32>} : memref<2x1x1024xf32, #tpu.memory_space<vmem>>, vector<1x1x1024xf32>,
    %c1 = arith.constant 1 : index
    %c0_4 = arith.constant 0 : index
    %c0_5 = arith.constant 0 : index
    %5 = vector.load %arg3[%c1, %c0_4, %c0_5] : memref<2x1x1024xf32, #tpu.memory_space<vmem>>, vector<1x1x1024xf32>
    %6 = vector.shape_cast %5 : vector<1x1x1024xf32> to vector<1x1024xf32>
    %7 = vector.shape_cast %1 : vector<1x1024xf32> to vector<1x1x1024xf32>
    tpu.vector_store %arg3[%c1, %c0_4, %c0_5], %7 {strides = array<i32>} : memref<2x1x1024xf32, #tpu.memory_space<vmem>>, vector<1x1x1024xf32>,
    return
  }
  func.func @transform_0(%arg0: i32, %arg1: i32) -> (i32, i32) {
    %c0_i32 = arith.constant 0 : i32
    return %arg0, %arg1 : i32, i32
  }
  func.func @transform_1(%arg0: i32, %arg1: i32) -> (i32, i32, i32) {
    %c0_i32 = arith.constant 0 : i32
    %c0_i32_0 = arith.constant 0 : i32
    return %c0_i32, %arg0, %arg1 : i32, i32, i32
  }
}

</mosaic_0001>

<llo_original>
// kernel: tpu_custom_call.1
$region0: #{tpu_custom_call.1}
  #allocation0 [shape = 'u32[]', space=smem, size = 0x4, offset = 0x4, fixed_abs, tag = 'smem constant byte address 0x4 - core index']
  #allocation1 [shape = 'u32[144,128]{1,0:T(1,128)}', space=vmem, size = 0x12000, scoped, tag = 'internal scratch']
  %s0 = inlined_call_operand.hbm [shape: f32[1,1024], index: 0, kind: input, shape index: {}]
  %s1 = inlined_call_operand.hbm [shape: f32[2,1,1024], index: 1, kind: output, shape index: {}]
  %s2 = sld [smem:[#allocation0]]
  $region18: #{tpu_custom_call.1} parent=0
    _
  %s4 = ssub.s32 1, %s2
  %s5 = scalar_select 0, %s4, %s2
  $region1: #{tpu_custom_call.1} parent=0
    #allocation2 [shape = 'u8[4096]{0}', space=vmem, size = 0x1000, scoped, tag = 'input window, operand 0, single buffered']
    #allocation3 [shape = 's32[1]{0}', space=sflag, size = 0x4, scoped, tag = 'scoped memory for tpu_custom_call.1']
    #allocation4 [shape = 's32[1]{0}', space=sflag, size = 0x4, scoped, tag = 'scoped memory for tpu_custom_call.1']
    #allocation5 [shape = 'u8[8192]{0}', space=vmem, size = 0x2000, scoped, tag = 'output window, operand 0, single buffered']
    %6 = vsyncpa [#allocation3], 0
    %7 = vsyncpa [#allocation4], 0
    // Predicated region
    $region2: #{tpu_custom_call.1} parent=1 // pred_check
      _
    $region3: #{tpu_custom_call.1} parent=1 // pred_check_branch
      %9 = sbr.rel (0) target = $region5
    $region4: #{tpu_custom_call.1} parent=1 // pred_region
      %s11 = ssub.s32 128, 128
      %12 = vsyncadd [#allocation3], %s11
      %s14 = sshll.u32 [#allocation2], 4
      %s15 = int_to_ptr.vmem [resolvable:$true] %s14
      %17 = dma.hbm_to_vmem [thread:$0]  %s0, 128, %s15, [#allocation3]
    $region5: #{tpu_custom_call.1} parent=1 // pred_fallthru
      _
    // Predicated region
    $region6: #{tpu_custom_call.1} parent=1 // pred_check
      _
    $region7: #{tpu_custom_call.1} parent=1 // pred_check_branch
      %19 = sbr.rel (0) target = $region9
    $region8: #{tpu_custom_call.1} parent=1 // pred_region
      %20 = dma.done [#allocation3], 128
    $region9: #{tpu_custom_call.1} parent=1 // pred_fallthru
      _
    %v21 = vld [vmem:[#allocation2] sm:$0xff]
    %v22 = vtanh.pop %v21
    %23 = vst [vmem:[#allocation5] sm:$0xff] %v22
    %s24 = scalar_lea.vmem [#allocation5], 8
    %25 = vst [vmem:[%s24] sm:$0xff] %v22
    // Predicated region
    $region10: #{tpu_custom_call.1} parent=1 // pred_check
      _
    $region11: #{tpu_custom_call.1} parent=1 // pred_check_branch
      %27 = sbr.rel (0) target = $region13
    $region12: #{tpu_custom_call.1} parent=1 // pred_region
      %s29 = ssub.s32 256, 256
      %30 = vsyncadd [#allocation4], %s29
      %s31 = sshll.u32 [#allocation5], 4
      %s32 = int_to_ptr.vmem [resolvable:$true] %s31
      %37 = dma.vmem_to_hbm [thread:$0]  %s32, 256, %s1, [#allocation4], 128, 128, 8
    $region13: #{tpu_custom_call.1} parent=1 // pred_fallthru
      _
    // Predicated region
    $region14: #{tpu_custom_call.1} parent=1 // pred_check
      _
    $region15: #{tpu_custom_call.1} parent=1 // pred_check_branch
      %39 = sbr.rel (0) target = $region17
    $region16: #{tpu_custom_call.1} parent=1 // pred_region
      %40 = dma.done [#allocation4], 256
    $region17: #{tpu_custom_call.1} parent=1 // pred_fallthru
      _
    %41 = vsyncpa [#allocation3], 1
    %42 = vsyncpa [#allocation4], 1

</llo_original>
